<compile_context>
chip_gen: v6e
topology: v6e:2x2x1
jax: 0.10.0
libtpu: 0.0.40
codegen_flags: <defaults>
</compile_context>

<pallas_src>
import jax
import jax.numpy as jnp
from jax.experimental import pallas as pl
from jax.experimental.pallas import tpu as pltpu


def _round_up(x: int, m: int) -> int:
    return (x + m - 1) // m * m


def _memory_merge_kernel(ms_ref, mg_ref, w1_ref, w2_ref, b_ref, o_ref):
    # Two MXU matmuls with f32 accumulation + one broadcast VPU add, all on
    # VMEM-resident tiles; cast to the output dtype only at the final store.
    acc = jnp.dot(ms_ref[...], w1_ref[...], preferred_element_type=jnp.float32)
    acc = acc + jnp.dot(mg_ref[...], w2_ref[...], preferred_element_type=jnp.float32)
    acc = acc + b_ref[...].astype(jnp.float32)  # (1, Dn) broadcasts over rows
    o_ref[...] = acc.astype(o_ref.dtype)


def memory_merge(memory_s, memory_g, W1, W2, bias):
    """out = memory_s @ W1 + memory_g @ W2 + bias   (memory_* : [..., D])."""
    if memory_g.shape != memory_s.shape:
        raise ValueError(
            f"memory_s/memory_g shape mismatch: {memory_s.shape} vs {memory_g.shape}"
        )
    orig_shape = memory_s.shape
    out_dtype = memory_s.dtype
    D = orig_shape[-1]
    if W1.shape != (D, D) or W2.shape != (D, D) or bias.shape != (D,):
        raise ValueError("parameter shapes do not match memory_dimension")

    ms = memory_s.reshape(-1, D)
    mg = memory_g.reshape(-1, D)
    B = ms.shape[0]

    # ---- batch (M) tiling --------------------------------------------------
    Bp = _round_up(B, 8)  # sublane-align only; no large batch padding
    act_isz = ms.dtype.itemsize
    out_isz = jnp.dtype(out_dtype).itemsize
    # Keep the (double-buffered) activation + output tiles within a modest VMEM
    # slice so they never crowd out the weight blocks.
    bytes_per_row = 2 * 2 * D * act_isz + 2 * D * out_isz
    max_block_m = max(8, min(1024, (8 << 20) // max(1, bytes_per_row)) // 8 * 8)

    if Bp <= 8:
        block_m = Bp                              # single tiny step
    elif Bp <= 2 * max_block_m:
        # Exactly 2 blocks: both v7x TensorCores get work on the "parallel"
        # axis; on 1-TC chips (v5e/v6e) two big blocks vs one is ~noise.
        block_m = _round_up(pl.cdiv(Bp, 2), 8)
        Bp = 2 * block_m
    else:
        block_m = max_block_m                     # HBM-roofline-sized blocks
        Bp = _round_up(B, block_m)                # < block_m rows of pad waste

    # ---- lane (N) padding: only when output store bandwidth matters ---------
    pad_lanes = (D % 128 != 0) and (Bp >= 512)
    Dn = _round_up(D, 128) if pad_lanes else D

    if Bp != B:
        ms = jnp.pad(ms, ((0, Bp - B), (0, 0)))
        mg = jnp.pad(mg, ((0, Bp - B), (0, 0)))
    bias2d = bias.reshape(1, D)
    if pad_lanes:
        # TODO(synk): for callers with D % 128 != 0 and large B, hoist this
        # O(D^2) weight/bias pad out of the per-call path (precompute at setup).
        W1 = jnp.pad(W1, ((0, 0), (0, Dn - D)))
        W2 = jnp.pad(W2, ((0, 0), (0, Dn - D)))
        bias2d = jnp.pad(bias2d, ((0, 0), (0, Dn - D)))

    grid = (Bp // block_m,)

    def _run(single_buffer_weights: bool):
        if single_buffer_weights:
            # Constant-index weight/bias blocks never change: one VMEM buffer
            # is enough, halving their VMEM footprint (matters as D grows,
            # especially on v7x's 64 MiB VMEM).
            w_kw = dict(pipeline_mode=pl.Buffered(1))
        else:
            w_kw = {}
        in_specs = [
            pl.BlockSpec((block_m, D), lambda i: (i, 0)),     # memory_s tile
            pl.BlockSpec((block_m, D), lambda i: (i, 0)),     # memory_g tile
            pl.BlockSpec((D, Dn), lambda i: (0, 0), **w_kw),  # W1 (resident)
            pl.BlockSpec((D, Dn), lambda i: (0, 0), **w_kw),  # W2 (resident)
            pl.BlockSpec((1, Dn), lambda i: (0, 0), **w_kw),  # bias (resident)
        ]
        return pl.pallas_call(
            _memory_merge_kernel,
            out_shape=jax.ShapeDtypeStruct((Bp, Dn), out_dtype),
            grid=grid,
            in_specs=in_specs,
            out_specs=pl.BlockSpec((block_m, Dn), lambda i: (i, 0)),
            compiler_params=pltpu.CompilerParams(
                dimension_semantics=("parallel",),  # M axis shards across v7x's 2 TCs
                vmem_limit_bytes=64 << 20,          # headroom above 16/32 MiB defaults
            ),
        )(ms, mg, W1, W2, bias2d)

    # TODO(synk): for very large D (weight blocks approaching the VMEM limit,
    # ~D>=1.4K on v5e / ~2K on v6e-v7x) add N/K tiling with an f32 VMEM
    # accumulator + pl.when init/finalize (reduction axis last, "arbitrary";
    # tn=256 on v6e/v7x, 128 on v5e).
    try:
        out = _run(single_buffer_weights=True)
    except Exception:
        # pl.Buffered(1) not supported by this jax/Mosaic build -> fall back to
        # the default double-buffered weight path (identical numerics).
        out = _run(single_buffer_weights=False)

    if Bp != B or Dn != D:
        out = out[:B, :D]
    return out.reshape(orig_shape)


if __name__ == "__main__":
    D = 32            # memory_dimension
    lead = (2, 4)     # arbitrary leading dims -> 8 memory rows total

    key = jax.random.PRNGKey(0)
    k_s, k_g, k_w1, k_w2, k_b = jax.random.split(key, 5)

    memory_s = jax.random.normal(k_s, lead + (D,), dtype=jnp.float32)
    memory_g = jax.random.normal(k_g, lead + (D,), dtype=jnp.float32)
    # The module initializes parameters to zeros; use small random values so
    # the check is non-trivial.
    W1 = jax.random.normal(k_w1, (D, D), dtype=jnp.float32) * 0.1
    W2 = jax.random.normal(k_w2, (D, D), dtype=jnp.float32) * 0.1
    bias = jax.random.normal(k_b, (D,), dtype=jnp.float32) * 0.1

    out = jax.block_until_ready(memory_merge(memory_s, memory_g, W1, W2, bias))

    # Reference with PyTorch-forward semantics. Both the kernel and the XLA
    # reference run f32 storage with the TPU MXU's default f32 matmul
    # precision, so only small rounding-path differences are expected.
    ref = memory_s @ W1 + memory_g @ W2 + bias
    assert out.shape == memory_s.shape
    assert out.dtype == memory_s.dtype
    assert jnp.allclose(out, ref, atol=1e-2, rtol=1e-2), "mismatch vs reference"

    print("KERNEL_OK")
</pallas_src>

<mosaic_0001>
module attributes {stable_mosaic.version = 11 : i64} {
  func.func @_memory_merge_kernel(%arg0: i32, %arg1: memref<8x32xf32, #tpu.memory_space<vmem>>, %arg2: memref<8x32xf32, #tpu.memory_space<vmem>>, %arg3: memref<32x32xf32, #tpu.memory_space<vmem>>, %arg4: memref<32x32xf32, #tpu.memory_space<vmem>>, %arg5: memref<1x32xf32, #tpu.memory_space<vmem>>, %arg6: memref<8x32xf32, #tpu.memory_space<vmem>>) attributes {dimension_semantics = [#tpu.dimension_semantics<parallel>], iteration_bounds = array<i64: 1>, scalar_prefetch = 0 : i64, scratch_operands = 0 : i64, tpu.core_type = #tpu.core_type<tc>, window_params = [{transform_indices = @transform_0, window_bounds = array<i64: 8, 32>}, {transform_indices = @transform_1, window_bounds = array<i64: 8, 32>}, {pipeline_mode = #tpu.pipeline_mode<synchronous>, transform_indices = @transform_2, window_bounds = array<i64: 32, 32>}, {pipeline_mode = #tpu.pipeline_mode<synchronous>, transform_indices = @transform_3, window_bounds = array<i64: 32, 32>}, {pipeline_mode = #tpu.pipeline_mode<synchronous>, transform_indices = @transform_4, window_bounds = array<i64: 1, 32>}, {transform_indices = @transform_5, window_bounds = array<i64: 8, 32>}]} {
    %c0 = arith.constant 0 : index
    %c0_0 = arith.constant 0 : index
    %0 = vector.load %arg1[%c0, %c0_0] : memref<8x32xf32, #tpu.memory_space<vmem>>, vector<8x32xf32>
    %c0_1 = arith.constant 0 : index
    %c0_2 = arith.constant 0 : index
    %1 = vector.load %arg3[%c0_1, %c0_2] : memref<32x32xf32, #tpu.memory_space<vmem>>, vector<32x32xf32>
    %cst = arith.constant dense<0.000000e+00> : vector<8x32xf32>
    %2 = tpu.matmul %0, %1, %cst {dimension_numbers = #tpu.dot_dimension_numbers<[1], [0], [0], [1], [0, 0, 1, 1], [], []>} : vector<8x32xf32>, vector<32x32xf32>, vector<8x32xf32> -> vector<8x32xf32>
    %c0_3 = arith.constant 0 : index
    %c0_4 = arith.constant 0 : index
    %3 = vector.load %arg2[%c0_3, %c0_4] : memref<8x32xf32, #tpu.memory_space<vmem>>, vector<8x32xf32>
    %c0_5 = arith.constant 0 : index
    %c0_6 = arith.constant 0 : index
    %4 = vector.load %arg4[%c0_5, %c0_6] : memref<32x32xf32, #tpu.memory_space<vmem>>, vector<32x32xf32>
    %cst_7 = arith.constant dense<0.000000e+00> : vector<8x32xf32>
    %5 = tpu.matmul %3, %4, %cst_7 {dimension_numbers = #tpu.dot_dimension_numbers<[1], [0], [0], [1], [0, 0, 1, 1], [], []>} : vector<8x32xf32>, vector<32x32xf32>, vector<8x32xf32> -> vector<8x32xf32>
    %6 = arith.addf %2, %5 : vector<8x32xf32>
    %c0_8 = arith.constant 0 : index
    %c0_9 = arith.constant 0 : index
    %7 = vector.load %arg5[%c0_8, %c0_9] : memref<1x32xf32, #tpu.memory_space<vmem>>, vector<1x32xf32>
    %8 = vector.broadcast %7 : vector<1x32xf32> to vector<8x32xf32>
    %9 = arith.addf %6, %8 : vector<8x32xf32>
    %c0_10 = arith.constant 0 : index
    %c0_11 = arith.constant 0 : index
    %10 = vector.load %arg6[%c0_10, %c0_11] : memref<8x32xf32, #tpu.memory_space<vmem>>, vector<8x32xf32>
    tpu.vector_store %arg6[%c0_10, %c0_11], %9 {strides = array<i32>} : memref<8x32xf32, #tpu.memory_space<vmem>>, vector<8x32xf32>,
    return
  }
  func.func @transform_0(%arg0: i32) -> (i32, i32) {
    %c0_i32 = arith.constant 0 : i32
    %c0_i32_0 = arith.constant 0 : i32
    return %arg0, %c0_i32 : i32, i32
  }
  func.func @transform_1(%arg0: i32) -> (i32, i32) {
    %c0_i32 = arith.constant 0 : i32
    %c0_i32_0 = arith.constant 0 : i32
    return %arg0, %c0_i32 : i32, i32
  }
  func.func @transform_2(%arg0: i32) -> (i32, i32) {
    %c0_i32 = arith.constant 0 : i32
    %c0_i32_0 = arith.constant 0 : i32
    %c0_i32_1 = arith.constant 0 : i32
    return %c0_i32, %c0_i32_0 : i32, i32
  }
  func.func @transform_3(%arg0: i32) -> (i32, i32) {
    %c0_i32 = arith.constant 0 : i32
    %c0_i32_0 = arith.constant 0 : i32
    %c0_i32_1 = arith.constant 0 : i32
    return %c0_i32, %c0_i32_0 : i32, i32
  }
  func.func @transform_4(%arg0: i32) -> (i32, i32) {
    %c0_i32 = arith.constant 0 : i32
    %c0_i32_0 = arith.constant 0 : i32
    %c0_i32_1 = arith.constant 0 : i32
    return %c0_i32, %c0_i32_0 : i32, i32
  }
  func.func @transform_5(%arg0: i32) -> (i32, i32) {
    %c0_i32 = arith.constant 0 : i32
    %c0_i32_0 = arith.constant 0 : i32
    return %arg0, %c0_i32 : i32, i32
  }
}

module attributes {stable_mosaic.version = 11 : i64} {
  func.func @_memory_merge_kernel(%arg0: i32, %arg1: memref<8x32xf32, #tpu.memory_space<vmem>>, %arg2: memref<8x32xf32, #tpu.memory_space<vmem>>, %arg3: memref<32x32xf32, #tpu.memory_space<vmem>>, %arg4: memref<32x32xf32, #tpu.memory_space<vmem>>, %arg5: memref<1x32xf32, #tpu.memory_space<vmem>>, %arg6: memref<8x32xf32, #tpu.memory_space<vmem>>) attributes {dimension_semantics = [#tpu.dimension_semantics<parallel>], iteration_bounds = array<i64: 1>, scalar_prefetch = 0 : i64, scratch_operands = 0 : i64, tpu.core_type = #tpu.core_type<tc>, window_params = [{transform_indices = @transform_0, window_bounds = array<i64: 8, 32>}, {transform_indices = @transform_1, window_bounds = array<i64: 8, 32>}, {pipeline_mode = #tpu.pipeline_mode<synchronous>, transform_indices = @transform_2, window_bounds = array<i64: 32, 32>}, {pipeline_mode = #tpu.pipeline_mode<synchronous>, transform_indices = @transform_3, window_bounds = array<i64: 32, 32>}, {pipeline_mode = #tpu.pipeline_mode<synchronous>, transform_indices = @transform_4, window_bounds = array<i64: 1, 32>}, {transform_indices = @transform_5, window_bounds = array<i64: 8, 32>}]} {
    %c0 = arith.constant 0 : index
    %c0_0 = arith.constant 0 : index
    %0 = vector.load %arg1[%c0, %c0_0] : memref<8x32xf32, #tpu.memory_space<vmem>>, vector<8x32xf32>
    %c0_1 = arith.constant 0 : index
    %c0_2 = arith.constant 0 : index
    %1 = vector.load %arg3[%c0_1, %c0_2] : memref<32x32xf32, #tpu.memory_space<vmem>>, vector<32x32xf32>
    %cst = arith.constant dense<0.000000e+00> : vector<8x32xf32>
    %2 = tpu.matmul %0, %1, %cst {dimension_numbers = #tpu.dot_dimension_numbers<[1], [0], [0], [1], [0, 0, 1, 1], [], []>} : vector<8x32xf32>, vector<32x32xf32>, vector<8x32xf32> -> vector<8x32xf32>
    %c0_3 = arith.constant 0 : index
    %c0_4 = arith.constant 0 : index
    %3 = vector.load %arg2[%c0_3, %c0_4] : memref<8x32xf32, #tpu.memory_space<vmem>>, vector<8x32xf32>
    %c0_5 = arith.constant 0 : index
    %c0_6 = arith.constant 0 : index
    %4 = vector.load %arg4[%c0_5, %c0_6] : memref<32x32xf32, #tpu.memory_space<vmem>>, vector<32x32xf32>
    %cst_7 = arith.constant dense<0.000000e+00> : vector<8x32xf32>
    %5 = tpu.matmul %3, %4, %cst_7 {dimension_numbers = #tpu.dot_dimension_numbers<[1], [0], [0], [1], [0, 0, 1, 1], [], []>} : vector<8x32xf32>, vector<32x32xf32>, vector<8x32xf32> -> vector<8x32xf32>
    %6 = arith.addf %2, %5 : vector<8x32xf32>
    %c0_8 = arith.constant 0 : index
    %c0_9 = arith.constant 0 : index
    %7 = vector.load %arg5[%c0_8, %c0_9] : memref<1x32xf32, #tpu.memory_space<vmem>>, vector<1x32xf32>
    %8 = vector.broadcast %7 : vector<1x32xf32> to vector<8x32xf32>
    %9 = arith.addf %6, %8 : vector<8x32xf32>
    %c0_10 = arith.constant 0 : index
    %c0_11 = arith.constant 0 : index
    %10 = vector.load %arg6[%c0_10, %c0_11] : memref<8x32xf32, #tpu.memory_space<vmem>>, vector<8x32xf32>
    tpu.vector_store %arg6[%c0_10, %c0_11], %9 {strides = array<i32>} : memref<8x32xf32, #tpu.memory_space<vmem>>, vector<8x32xf32>,
    return
  }
  func.func @transform_0(%arg0: i32) -> (i32, i32) {
    %c0_i32 = arith.constant 0 : i32
    %c0_i32_0 = arith.constant 0 : i32
    return %arg0, %c0_i32 : i32, i32
  }
  func.func @transform_1(%arg0: i32) -> (i32, i32) {
    %c0_i32 = arith.constant 0 : i32
    %c0_i32_0 = arith.constant 0 : i32
    return %arg0, %c0_i32 : i32, i32
  }
  func.func @transform_2(%arg0: i32) -> (i32, i32) {
    %c0_i32 = arith.constant 0 : i32
    %c0_i32_0 = arith.constant 0 : i32
    %c0_i32_1 = arith.constant 0 : i32
    return %c0_i32, %c0_i32_0 : i32, i32
  }
  func.func @transform_3(%arg0: i32) -> (i32, i32) {
    %c0_i32 = arith.constant 0 : i32
    %c0_i32_0 = arith.constant 0 : i32
    %c0_i32_1 = arith.constant 0 : i32
    return %c0_i32, %c0_i32_0 : i32, i32
  }
  func.func @transform_4(%arg0: i32) -> (i32, i32) {
    %c0_i32 = arith.constant 0 : i32
    %c0_i32_0 = arith.constant 0 : i32
    %c0_i32_1 = arith.constant 0 : i32
    return %c0_i32, %c0_i32_0 : i32, i32
  }
  func.func @transform_5(%arg0: i32) -> (i32, i32) {
    %c0_i32 = arith.constant 0 : i32
    %c0_i32_0 = arith.constant 0 : i32
    return %arg0, %c0_i32 : i32, i32
  }
}

</mosaic_0001>

<llo_original>
// kernel: tpu_custom_call.1
$region0: #{tpu_custom_call.1}
  #allocation0 [shape = 'u32[]', space=smem, size = 0x4, offset = 0x4, fixed_abs, tag = 'smem constant byte address 0x4 - core index']
  #allocation1 [shape = 'u32[144,128]{1,0:T(1,128)}', space=vmem, size = 0x12000, scoped, tag = 'internal scratch']
  %s0 = inlined_call_operand.hbm [shape: f32[8,32], index: 0, kind: input, shape index: {}]
  %s1 = inlined_call_operand.hbm [shape: f32[8,32], index: 1, kind: input, shape index: {}]
  %s2 = inlined_call_operand.hbm [shape: f32[32,32], index: 2, kind: input, shape index: {}]
  %s3 = inlined_call_operand.hbm [shape: f32[32,32], index: 3, kind: input, shape index: {}]
  %s4 = inlined_call_operand.vmem [shape: f32[1,32], index: 4, kind: input, shape index: {}]
  %s5 = inlined_call_operand.hbm [shape: f32[8,32], index: 5, kind: output, shape index: {}]
  %s6 = sld [smem:[#allocation0]]
  $region46: #{tpu_custom_call.1} parent=0
    _
  %s8 = ssub.s32 1, %s6
  %s9 = scalar_select 0, %s8, %s6
  $region1: #{tpu_custom_call.1} parent=0
    #allocation2 [shape = 'u8[4096]{0}', space=vmem, size = 0x1000, scoped, tag = 'input window, operand 0, single buffered']
    #allocation3 [shape = 's32[1]{0}', space=sflag, size = 0x4, scoped, tag = 'scoped memory for tpu_custom_call.1']
    #allocation4 [shape = 's32[1]{0}', space=sflag, size = 0x4, scoped, tag = 'scoped memory for tpu_custom_call.1']
    #allocation5 [shape = 'u8[4096]{0}', space=vmem, size = 0x1000, scoped, tag = 'input window, operand 1, single buffered']
    #allocation6 [shape = 's32[1]{0}', space=sflag, size = 0x4, scoped, tag = 'scoped memory for tpu_custom_call.1']
    #allocation7 [shape = 'u8[16384]{0}', space=vmem, size = 0x4000, scoped, tag = 'input window, operand 2, single buffered']
    #allocation8 [shape = 'u8[16384]{0}', space=vmem, size = 0x4000, scoped, tag = 'input window, operand 3, single buffered']
    #allocation9 [shape = 's32[1]{0}', space=sflag, size = 0x4, scoped, tag = 'scoped memory for tpu_custom_call.1']
    #allocation10 [shape = 'u8[4096]{0}', space=vmem, size = 0x1000, scoped, tag = 'output window, operand 0, single buffered']
    %10 = vsyncpa [#allocation3], 0
    %11 = vsyncpa [#allocation6], 0
    %12 = vsyncpa [#allocation9], 0
    %13 = vsyncpa [#allocation4], 0
    // Predicated region
    $region2: #{tpu_custom_call.1} parent=1 // pred_check
      _
    $region3: #{tpu_custom_call.1} parent=1 // pred_check_branch
      %15 = sbr.rel (0) target = $region5
    $region4: #{tpu_custom_call.1} parent=1 // pred_region
      %s17 = ssub.s32 128, 128
      %18 = vsyncadd [#allocation3], %s17
      %s20 = sshll.u32 [#allocation2], 4
      %s21 = int_to_ptr.vmem [resolvable:$true] %s20
      %23 = dma.hbm_to_vmem [thread:$0]  %s0, 128, %s21, [#allocation3]
    $region5: #{tpu_custom_call.1} parent=1 // pred_fallthru
      _
    // Predicated region
    $region6: #{tpu_custom_call.1} parent=1 // pred_check
      _
    $region7: #{tpu_custom_call.1} parent=1 // pred_check_branch
      %25 = sbr.rel (0) target = $region9
    $region8: #{tpu_custom_call.1} parent=1 // pred_region
      %s27 = ssub.s32 128, 128
      %28 = vsyncadd [#allocation6], %s27
      %s30 = sshll.u32 [#allocation5], 4
      %s31 = int_to_ptr.vmem [resolvable:$true] %s30
      %33 = dma.hbm_to_vmem [thread:$0]  %s1, 128, %s31, [#allocation6]
    $region9: #{tpu_custom_call.1} parent=1 // pred_fallthru
      _
    // Predicated region
    $region10: #{tpu_custom_call.1} parent=1 // pred_check
      _
    $region11: #{tpu_custom_call.1} parent=1 // pred_check_branch
      %35 = sbr.rel (0) target = $region13
    $region12: #{tpu_custom_call.1} parent=1 // pred_region
      %s37 = ssub.s32 512, 512
      %38 = vsyncadd [#allocation6], %s37
      %s39 = sshll.u32 [#allocation7], 4
      %s40 = int_to_ptr.vmem [resolvable:$true] %s39
      %45 = dma.hbm_to_vmem [thread:$0]  %s2, 512, %s40, [#allocation6], 128, 128, 8
    $region13: #{tpu_custom_call.1} parent=1 // pred_fallthru
      _
    // Predicated region
    $region14: #{tpu_custom_call.1} parent=1 // pred_check
      _
    $region15: #{tpu_custom_call.1} parent=1 // pred_check_branch
      %47 = sbr.rel (0) target = $region17
    $region16: #{tpu_custom_call.1} parent=1 // pred_region
      %s49 = ssub.s32 512, 512
      %50 = vsyncadd [#allocation9], %s49
      %s51 = sshll.u32 [#allocation8], 4
      %s52 = int_to_ptr.vmem [resolvable:$true] %s51
      %57 = dma.hbm_to_vmem [thread:$0]  %s3, 512, %s52, [#allocation9], 128, 128, 8
    $region17: #{tpu_custom_call.1} parent=1 // pred_fallthru
      _
    // Predicated region
    $region18: #{tpu_custom_call.1} parent=1 // pred_check
      _
    $region19: #{tpu_custom_call.1} parent=1 // pred_check_branch
      %59 = sbr.rel (0) target = $region21
    $region20: #{tpu_custom_call.1} parent=1 // pred_region
      _
    $region21: #{tpu_custom_call.1} parent=1 // pred_fallthru
      _
    // Predicated region
    $region22: #{tpu_custom_call.1} parent=1 // pred_check
      _
    $region23: #{tpu_custom_call.1} parent=1 // pred_check_branch
      %61 = sbr.rel (0) target = $region25
    $region24: #{tpu_custom_call.1} parent=1 // pred_region
      %62 = dma.done [#allocation3], 128
    $region25: #{tpu_custom_call.1} parent=1 // pred_fallthru
      _
    // Predicated region
    $region26: #{tpu_custom_call.1} parent=1 // pred_check
      _
    $region27: #{tpu_custom_call.1} parent=1 // pred_check_branch
      %64 = sbr.rel (0) target = $region29
    $region28: #{tpu_custom_call.1} parent=1 // pred_region
      %65 = dma.done [#allocation6], 128
    $region29: #{tpu_custom_call.1} parent=1 // pred_fallthru
      _
    // Predicated region
    $region30: #{tpu_custom_call.1} parent=1 // pred_check
      _
    $region31: #{tpu_custom_call.1} parent=1 // pred_check_branch
      %67 = sbr.rel (0) target = $region33
    $region32: #{tpu_custom_call.1} parent=1 // pred_region
      %68 = dma.done [#allocation6], 512
    $region33: #{tpu_custom_call.1} parent=1 // pred_fallthru
      _
    // Predicated region
    $region34: #{tpu_custom_call.1} parent=1 // pred_check
      _
    $region35: #{tpu_custom_call.1} parent=1 // pred_check_branch
      %70 = sbr.rel (0) target = $region37
    $region36: #{tpu_custom_call.1} parent=1 // pred_region
      %71 = dma.done [#allocation9], 512
    $region37: #{tpu_custom_call.1} parent=1 // pred_fallthru
      _
    %v72 = vld [vmem:[#allocation2] sm:$0xff]
    %v73 = vld [vmem:[#allocation7] sm:$0xff]
    %v74 = vld [vmem:[#allocation7 + $0x8] sm:$0xff]
    %v75 = vld [vmem:[#allocation7 + $0x10] sm:$0xff]
    %v76 = vld [vmem:[#allocation7 + $0x18] sm:$0xff]
    %v77 = vld [vmem:[#allocation5] sm:$0xff]
    %v78 = vld [vmem:[#allocation8] sm:$0xff]
    %v79 = vld [vmem:[#allocation8 + $0x8] sm:$0xff]
    %v80 = vld [vmem:[#allocation8 + $0x10] sm:$0xff]
    %v81 = vld [vmem:[#allocation8 + $0x18] sm:$0xff]
    %vm82 = vcmask 261120
    %v84 = vsel %vm82, %v77, 0
    %86 = vmatprep.subr.mxu0 0.0
    %87 = vmatpush1.msra.mxu0 0.0
    %88 = vmatprep.subr.mxu0 0.0
    %89 = vmatpush1.msra.mxu0 0.0
    %90 = vmatprep.subr.mxu0 0.0
    %91 = vmatpush1.msra.mxu0 0.0
    %92 = vmatprep.subr.mxu0 0.0
    %93 = vmatpush1.msra.mxu0 0.0
    %94 = vmatprep.subr.mxu0 0.0
    %95 = vmatpush1.msra.mxu0 0.0
    %96 = vmatprep.subr.mxu0 0.0
    %97 = vmatpush1.msra.mxu0 0.0
    %98 = vmatprep.subr.mxu0 0.0
    %99 = vmatpush1.msra.mxu0 0.0
    %100 = vmatprep.subr.mxu0 0.0
    %101 = vmatpush1.msra.mxu0 0.0
    %102 = vmatprep.subr.mxu0 0.0
    %103 = vmatpush1.msra.mxu0 0.0
    %104 = vmatprep.subr.mxu0 0.0
    %105 = vmatpush1.msra.mxu0 0.0
    %106 = vmatprep.subr.mxu0 0.0
    %107 = vmatpush1.msra.mxu0 0.0
    %108 = vmatprep.subr.mxu0 0.0
    %109 = vmatpush1.msra.mxu0 0.0
    %110 = vmatprep.subr.mxu0 0.0
    %111 = vmatpush1.msra.mxu0 %v81
    %112 = vmatprep.subr.mxu0 0.0
    %113 = vmatpush1.msra.mxu0 %v80
    %114 = vmatprep.subr.mxu0 0.0
    %115 = vmatpush1.msra.mxu0 %v79
    %116 = vmatprep.subr.mxu0 0.0
    %117 = vmatpush1.msra.mxu0 %v78
    %118 = vmatprep.subr.mxu0 0.0
    %119 = vmatpush2.msra.mxu0 0.0
    %120 = vmatprep.subr.mxu0 0.0
    %121 = vmatpush2.msra.mxu0 0.0
    %122 = vmatprep.subr.mxu0 0.0
    %123 = vmatpush2.msra.mxu0 0.0
    %124 = vmatprep.subr.mxu0 0.0
    %125 = vmatpush2.msra.mxu0 0.0
    %126 = vmatprep.subr.mxu0 0.0
    %127 = vmatpush2.msra.mxu0 0.0
    %128 = vmatprep.subr.mxu0 0.0
    %129 = vmatpush2.msra.mxu0 0.0
    %130 = vmatprep.subr.mxu0 0.0
    %131 = vmatpush2.msra.mxu0 0.0
    %132 = vmatprep.subr.mxu0 0.0
    %133 = vmatpush2.msra.mxu0 0.0
    %134 = vmatprep.subr.mxu0 0.0
    %135 = vmatpush2.msra.mxu0 0.0
    %136 = vmatprep.subr.mxu0 0.0
    %137 = vmatpush2.msra.mxu0 0.0
    %138 = vmatprep.subr.mxu0 0.0
    %139 = vmatpush2.msra.mxu0 0.0
    %140 = vmatprep.subr.mxu0 0.0
    %141 = vmatpush2.msra.mxu0 0.0
    %142 = vmatprep.subr.mxu0 0.0
    %143 = vmatpush2.msra.mxu0 0.0
    %144 = vmatprep.subr.mxu0 0.0
    %145 = vmatpush2.msra.mxu0 0.0
    %146 = vmatprep.subr.mxu0 0.0
    %147 = vmatpush2.msra.mxu0 0.0
    %148 = vmatprep.subr.mxu0 0.0
    %149 = vmatpush2.msra.mxu0 0.0
    %150 = vmatprep.mubr.f32.mxu0 0.0
    %151 = vmatmul.mubr.f32.gmra.mxu0 %v84
    %v152 = vpop.f32.mrf.mxu0
    %v153 = vadd.f32 0.0, %v152
    %v154 = vpop.f32.mrf.mxu0
    %155 = vdwg.mxu0
    %v157 = vsel %vm82, %v72, 0
    %159 = vmatprep.subr.mxu0 0.0
    %160 = vmatpush1.msra.mxu0 0.0
    %161 = vmatprep.subr.mxu0 0.0
    %162 = vmatpush1.msra.mxu0 0.0
    %163 = vmatprep.subr.mxu0 0.0
    %164 = vmatpush1.msra.mxu0 0.0
    %165 = vmatprep.subr.mxu0 0.0
    %166 = vmatpush1.msra.mxu0 0.0
    %167 = vmatprep.subr.mxu0 0.0
    %168 = vmatpush1.msra.mxu0 0.0
    %169 = vmatprep.subr.mxu0 0.0
    %170 = vmatpush1.msra.mxu0 0.0
    %171 = vmatprep.subr.mxu0 0.0
    %172 = vmatpush1.msra.mxu0 0.0
    %173 = vmatprep.subr.mxu0 0.0
    %174 = vmatpush1.msra.mxu0 0.0
    %175 = vmatprep.subr.mxu0 0.0
    %176 = vmatpush1.msra.mxu0 0.0
    %177 = vmatprep.subr.mxu0 0.0
    %178 = vmatpush1.msra.mxu0 0.0
    %179 = vmatprep.subr.mxu0 0.0
    %180 = vmatpush1.msra.mxu0 0.0
    %181 = vmatprep.subr.mxu0 0.0
    %182 = vmatpush1.msra.mxu0 0.0
    %183 = vmatprep.subr.mxu0 0.0
    %184 = vmatpush1.msra.mxu0 %v76
    %185 = vmatprep.subr.mxu0 0.0
    %186 = vmatpush1.msra.mxu0 %v75
    %187 = vmatprep.subr.mxu0 0.0
    %188 = vmatpush1.msra.mxu0 %v74
    %189 = vmatprep.subr.mxu0 0.0
    %190 = vmatpush1.msra.mxu0 %v73
    %191 = vmatprep.subr.mxu0 0.0
    %192 = vmatpush2.msra.mxu0 0.0
    %193 = vmatprep.subr.mxu0 0.0
    %194 = vmatpush2.msra.mxu0 0.0
    %195 = vmatprep.subr.mxu0 0.0
    %196 = vmatpush2.msra.mxu0 0.0
    %197 = vmatprep.subr.mxu0 0.0
    %198 = vmatpush2.msra.mxu0 0.0
    %199 = vmatprep.subr.mxu0 0.0
    %200 = vmatpush2.msra.mxu0 0.0
    %201 = vmatprep.subr.mxu0 0.0
    %202 = vmatpush2.msra.mxu0 0.0
    %203 = vmatprep.subr.mxu0 0.0
    %204 = vmatpush2.msra.mxu0 0.0
    %205 = vmatprep.subr.mxu0 0.0
    %206 = vmatpush2.msra.mxu0 0.0
    %207 = vmatprep.subr.mxu0 0.0
    %208 = vmatpush2.msra.mxu0 0.0
    %209 = vmatprep.subr.mxu0 0.0
    %210 = vmatpush2.msra.mxu0 0.0
    %211 = vmatprep.subr.mxu0 0.0
    %212 = vmatpush2.msra.mxu0 0.0
    %213 = vmatprep.subr.mxu0 0.0
    %214 = vmatpush2.msra.mxu0 0.0
    %215 = vmatprep.subr.mxu0 0.0
    %216 = vmatpush2.msra.mxu0 0.0
    %217 = vmatprep.subr.mxu0 0.0
    %218 = vmatpush2.msra.mxu0 0.0
    %219 = vmatprep.subr.mxu0 0.0
    %220 = vmatpush2.msra.mxu0 0.0
    %221 = vmatprep.subr.mxu0 0.0
    %222 = vmatpush2.msra.mxu0 0.0
    %223 = vmatprep.mubr.f32.mxu0 0.0
    %224 = vmatmul.mubr.f32.gmra.mxu0 %v157
    %v225 = vpop.f32.mrf.mxu0
    %v226 = vadd.f32 %v153, %v225
    %v227 = vpop.f32.mrf.mxu0
    %228 = vdwg.mxu0
    %v229 = vld [vmem:[%s4] sm:$0x1]
    %v231 = vlaneseq
    %v232 = vshrl.u32 %v231, 7
    %v233 = vsub.s32 0, %v232
    %v234 = vrot.slane %v229, %v233
    %v236 = vadd.f32 %v226, %v234
    %237 = vst.msk [vmem:[#allocation10] sm:$0xff] %vm82, %v236
    // Predicated region
    $region38: #{tpu_custom_call.1} parent=1 // pred_check
      _
    $region39: #{tpu_custom_call.1} parent=1 // pred_check_branch
      %239 = sbr.rel (0) target = $region41
    $region40: #{tpu_custom_call.1} parent=1 // pred_region
      %s241 = ssub.s32 128, 128
      %242 = vsyncadd [#allocation4], %s241
      %s244 = sshll.u32 [#allocation10], 4
      %s245 = int_to_ptr.vmem [resolvable:$true] %s244
      %247 = dma.vmem_to_hbm [thread:$0]  %s245, 128, %s5, [#allocation4]
    $region41: #{tpu_custom_call.1} parent=1 // pred_fallthru
      _
    // Predicated region
    $region42: #{tpu_custom_call.1} parent=1 // pred_check
      _
    $region43: #{tpu_custom_call.1} parent=1 // pred_check_branch
      %249 = sbr.rel (0) target = $region45
    $region44: #{tpu_custom_call.1} parent=1 // pred_region
      %250 = dma.done [#allocation4], 128
    $region45: #{tpu_custom_call.1} parent=1 // pred_fallthru
      _
    %251 = vsyncpa [#allocation3], 1
    %252 = vsyncpa [#allocation6], 1
    %253 = vsyncpa [#allocation9], 1
    %254 = vsyncpa [#allocation4], 1

// kernel: tpu_custom_call.1
$region0: #{tpu_custom_call.1}
  #allocation0 [shape = 'u32[]', space=smem, size = 0x4, offset = 0x4, fixed_abs, tag = 'smem constant byte address 0x4 - core index']
  #allocation1 [shape = 'u32[144,128]{1,0:T(1,128)}', space=vmem, size = 0x12000, scoped, tag = 'internal scratch']
  %s0 = inlined_call_operand.hbm [shape: f32[8,32], index: 0, kind: input, shape index: {}]
  %s1 = inlined_call_operand.hbm [shape: f32[8,32], index: 1, kind: input, shape index: {}]
  %s2 = inlined_call_operand.hbm [shape: f32[32,32], index: 2, kind: input, shape index: {}]
  %s3 = inlined_call_operand.hbm [shape: f32[32,32], index: 3, kind: input, shape index: {}]
  %s4 = inlined_call_operand.vmem [shape: f32[1,32], index: 4, kind: input, shape index: {}]
  %s5 = inlined_call_operand.hbm [shape: f32[8,32], index: 5, kind: output, shape index: {}]
  %s6 = sld [smem:[#allocation0]]
  $region46: #{tpu_custom_call.1} parent=0
    _
  %s8 = ssub.s32 1, %s6
  %s9 = scalar_select 0, %s8, %s6
  $region1: #{tpu_custom_call.1} parent=0
    #allocation2 [shape = 'u8[4096]{0}', space=vmem, size = 0x1000, scoped, tag = 'input window, operand 0, single buffered']
    #allocation3 [shape = 's32[1]{0}', space=sflag, size = 0x4, scoped, tag = 'scoped memory for tpu_custom_call.1']
    #allocation4 [shape = 's32[1]{0}', space=sflag, size = 0x4, scoped, tag = 'scoped memory for tpu_custom_call.1']
    #allocation5 [shape = 'u8[4096]{0}', space=vmem, size = 0x1000, scoped, tag = 'input window, operand 1, single buffered']
    #allocation6 [shape = 's32[1]{0}', space=sflag, size = 0x4, scoped, tag = 'scoped memory for tpu_custom_call.1']
    #allocation7 [shape = 'u8[16384]{0}', space=vmem, size = 0x4000, scoped, tag = 'input window, operand 2, single buffered']
    #allocation8 [shape = 'u8[16384]{0}', space=vmem, size = 0x4000, scoped, tag = 'input window, operand 3, single buffered']
    #allocation9 [shape = 's32[1]{0}', space=sflag, size = 0x4, scoped, tag = 'scoped memory for tpu_custom_call.1']
    #allocation10 [shape = 'u8[4096]{0}', space=vmem, size = 0x1000, scoped, tag = 'output window, operand 0, single buffered']
    %10 = vsyncpa [#allocation3], 0
    %11 = vsyncpa [#allocation6], 0
    %12 = vsyncpa [#allocation9], 0
    %13 = vsyncpa [#allocation4], 0
    // Predicated region
    $region2: #{tpu_custom_call.1} parent=1 // pred_check
      _
    $region3: #{tpu_custom_call.1} parent=1 // pred_check_branch
      %15 = sbr.rel (0) target = $region5
    $region4: #{tpu_custom_call.1} parent=1 // pred_region
      %s17 = ssub.s32 128, 128
      %18 = vsyncadd [#allocation3], %s17
      %s20 = sshll.u32 [#allocation2], 4
      %s21 = int_to_ptr.vmem [resolvable:$true] %s20
      %23 = dma.hbm_to_vmem [thread:$0]  %s0, 128, %s21, [#allocation3]
    $region5: #{tpu_custom_call.1} parent=1 // pred_fallthru
      _
    // Predicated region
    $region6: #{tpu_custom_call.1} parent=1 // pred_check
      _
    $region7: #{tpu_custom_call.1} parent=1 // pred_check_branch
      %25 = sbr.rel (0) target = $region9
    $region8: #{tpu_custom_call.1} parent=1 // pred_region
      %s27 = ssub.s32 128, 128
      %28 = vsyncadd [#allocation6], %s27
      %s30 = sshll.u32 [#allocation5], 4
      %s31 = int_to_ptr.vmem [resolvable:$true] %s30
      %33 = dma.hbm_to_vmem [thread:$0]  %s1, 128, %s31, [#allocation6]
    $region9: #{tpu_custom_call.1} parent=1 // pred_fallthru
      _
    // Predicated region
    $region10: #{tpu_custom_call.1} parent=1 // pred_check
      _
    $region11: #{tpu_custom_call.1} parent=1 // pred_check_branch
      %35 = sbr.rel (0) target = $region13
    $region12: #{tpu_custom_call.1} parent=1 // pred_region
      %s37 = ssub.s32 512, 512
      %38 = vsyncadd [#allocation6], %s37
      %s39 = sshll.u32 [#allocation7], 4
      %s40 = int_to_ptr.vmem [resolvable:$true] %s39
      %45 = dma.hbm_to_vmem [thread:$0]  %s2, 512, %s40, [#allocation6], 128, 128, 8
    $region13: #{tpu_custom_call.1} parent=1 // pred_fallthru
      _
    // Predicated region
    $region14: #{tpu_custom_call.1} parent=1 // pred_check
      _
    $region15: #{tpu_custom_call.1} parent=1 // pred_check_branch
      %47 = sbr.rel (0) target = $region17
    $region16: #{tpu_custom_call.1} parent=1 // pred_region
      %s49 = ssub.s32 512, 512
      %50 = vsyncadd [#allocation9], %s49
      %s51 = sshll.u32 [#allocation8], 4
      %s52 = int_to_ptr.vmem [resolvable:$true] %s51
      %57 = dma.hbm_to_vmem [thread:$0]  %s3, 512, %s52, [#allocation9], 128, 128, 8
    $region17: #{tpu_custom_call.1} parent=1 // pred_fallthru
      _
    // Predicated region
    $region18: #{tpu_custom_call.1} parent=1 // pred_check
      _
    $region19: #{tpu_custom_call.1} parent=1 // pred_check_branch
      %59 = sbr.rel (0) target = $region21
    $region20: #{tpu_custom_call.1} parent=1 // pred_region
      _
    $region21: #{tpu_custom_call.1} parent=1 // pred_fallthru
      _
    // Predicated region
    $region22: #{tpu_custom_call.1} parent=1 // pred_check
      _
    $region23: #{tpu_custom_call.1} parent=1 // pred_check_branch
      %61 = sbr.rel (0) target = $region25
    $region24: #{tpu_custom_call.1} parent=1 // pred_region
      %62 = dma.done [#allocation3], 128
    $region25: #{tpu_custom_call.1} parent=1 // pred_fallthru
      _
    // Predicated region
    $region26: #{tpu_custom_call.1} parent=1 // pred_check
      _
    $region27: #{tpu_custom_call.1} parent=1 // pred_check_branch
      %64 = sbr.rel (0) target = $region29
    $region28: #{tpu_custom_call.1} parent=1 // pred_region
      %65 = dma.done [#allocation6], 128
    $region29: #{tpu_custom_call.1} parent=1 // pred_fallthru
      _
    // Predicated region
    $region30: #{tpu_custom_call.1} parent=1 // pred_check
      _
    $region31: #{tpu_custom_call.1} parent=1 // pred_check_branch
      %67 = sbr.rel (0) target = $region33
    $region32: #{tpu_custom_call.1} parent=1 // pred_region
      %68 = dma.done [#allocation6], 512
    $region33: #{tpu_custom_call.1} parent=1 // pred_fallthru
      _
    // Predicated region
    $region34: #{tpu_custom_call.1} parent=1 // pred_check
      _
    $region35: #{tpu_custom_call.1} parent=1 // pred_check_branch
      %70 = sbr.rel (0) target = $region37
    $region36: #{tpu_custom_call.1} parent=1 // pred_region
      %71 = dma.done [#allocation9], 512
    $region37: #{tpu_custom_call.1} parent=1 // pred_fallthru
      _
    %v72 = vld [vmem:[#allocation2] sm:$0xff]
    %v73 = vld [vmem:[#allocation7] sm:$0xff]
    %v74 = vld [vmem:[#allocation7 + $0x8] sm:$0xff]
    %v75 = vld [vmem:[#allocation7 + $0x10] sm:$0xff]
    %v76 = vld [vmem:[#allocation7 + $0x18] sm:$0xff]
    %v77 = vld [vmem:[#allocation5] sm:$0xff]
    %v78 = vld [vmem:[#allocation8] sm:$0xff]
    %v79 = vld [vmem:[#allocation8 + $0x8] sm:$0xff]
    %v80 = vld [vmem:[#allocation8 + $0x10] sm:$0xff]
    %v81 = vld [vmem:[#allocation8 + $0x18] sm:$0xff]
    %vm82 = vcmask 261120
    %v84 = vsel %vm82, %v77, 0
    %86 = vmatprep.subr.mxu0 0.0
    %87 = vmatpush1.msra.mxu0 0.0
    %88 = vmatprep.subr.mxu0 0.0
    %89 = vmatpush1.msra.mxu0 0.0
    %90 = vmatprep.subr.mxu0 0.0
    %91 = vmatpush1.msra.mxu0 0.0
    %92 = vmatprep.subr.mxu0 0.0
    %93 = vmatpush1.msra.mxu0 0.0
    %94 = vmatprep.subr.mxu0 0.0
    %95 = vmatpush1.msra.mxu0 0.0
    %96 = vmatprep.subr.mxu0 0.0
    %97 = vmatpush1.msra.mxu0 0.0
    %98 = vmatprep.subr.mxu0 0.0
    %99 = vmatpush1.msra.mxu0 0.0
    %100 = vmatprep.subr.mxu0 0.0
    %101 = vmatpush1.msra.mxu0 0.0
    %102 = vmatprep.subr.mxu0 0.0
    %103 = vmatpush1.msra.mxu0 0.0
    %104 = vmatprep.subr.mxu0 0.0
    %105 = vmatpush1.msra.mxu0 0.0
    %106 = vmatprep.subr.mxu0 0.0
    %107 = vmatpush1.msra.mxu0 0.0
    %108 = vmatprep.subr.mxu0 0.0
    %109 = vmatpush1.msra.mxu0 0.0
    %110 = vmatprep.subr.mxu0 0.0
    %111 = vmatpush1.msra.mxu0 %v81
    %112 = vmatprep.subr.mxu0 0.0
    %113 = vmatpush1.msra.mxu0 %v80
    %114 = vmatprep.subr.mxu0 0.0
    %115 = vmatpush1.msra.mxu0 %v79
    %116 = vmatprep.subr.mxu0 0.0
    %117 = vmatpush1.msra.mxu0 %v78
    %118 = vmatprep.subr.mxu0 0.0
    %119 = vmatpush2.msra.mxu0 0.0
    %120 = vmatprep.subr.mxu0 0.0
    %121 = vmatpush2.msra.mxu0 0.0
    %122 = vmatprep.subr.mxu0 0.0
    %123 = vmatpush2.msra.mxu0 0.0
    %124 = vmatprep.subr.mxu0 0.0
    %125 = vmatpush2.msra.mxu0 0.0
    %126 = vmatprep.subr.mxu0 0.0
    %127 = vmatpush2.msra.mxu0 0.0
    %128 = vmatprep.subr.mxu0 0.0
    %129 = vmatpush2.msra.mxu0 0.0
    %130 = vmatprep.subr.mxu0 0.0
    %131 = vmatpush2.msra.mxu0 0.0
    %132 = vmatprep.subr.mxu0 0.0
    %133 = vmatpush2.msra.mxu0 0.0
    %134 = vmatprep.subr.mxu0 0.0
    %135 = vmatpush2.msra.mxu0 0.0
    %136 = vmatprep.subr.mxu0 0.0
    %137 = vmatpush2.msra.mxu0 0.0
    %138 = vmatprep.subr.mxu0 0.0
    %139 = vmatpush2.msra.mxu0 0.0
    %140 = vmatprep.subr.mxu0 0.0
    %141 = vmatpush2.msra.mxu0 0.0
    %142 = vmatprep.subr.mxu0 0.0
    %143 = vmatpush2.msra.mxu0 0.0
    %144 = vmatprep.subr.mxu0 0.0
    %145 = vmatpush2.msra.mxu0 0.0
    %146 = vmatprep.subr.mxu0 0.0
    %147 = vmatpush2.msra.mxu0 0.0
    %148 = vmatprep.subr.mxu0 0.0
    %149 = vmatpush2.msra.mxu0 0.0
    %150 = vmatprep.mubr.f32.mxu0 0.0
    %151 = vmatmul.mubr.f32.gmra.mxu0 %v84
    %v152 = vpop.f32.mrf.mxu0
    %v153 = vadd.f32 0.0, %v152
    %v154 = vpop.f32.mrf.mxu0
    %155 = vdwg.mxu0
    %v157 = vsel %vm82, %v72, 0
    %159 = vmatprep.subr.mxu0 0.0
    %160 = vmatpush1.msra.mxu0 0.0
    %161 = vmatprep.subr.mxu0 0.0
    %162 = vmatpush1.msra.mxu0 0.0
    %163 = vmatprep.subr.mxu0 0.0
    %164 = vmatpush1.msra.mxu0 0.0
    %165 = vmatprep.subr.mxu0 0.0
    %166 = vmatpush1.msra.mxu0 0.0
    %167 = vmatprep.subr.mxu0 0.0
    %168 = vmatpush1.msra.mxu0 0.0
    %169 = vmatprep.subr.mxu0 0.0
    %170 = vmatpush1.msra.mxu0 0.0
    %171 = vmatprep.subr.mxu0 0.0
    %172 = vmatpush1.msra.mxu0 0.0
    %173 = vmatprep.subr.mxu0 0.0
    %174 = vmatpush1.msra.mxu0 0.0
    %175 = vmatprep.subr.mxu0 0.0
    %176 = vmatpush1.msra.mxu0 0.0
    %177 = vmatprep.subr.mxu0 0.0
    %178 = vmatpush1.msra.mxu0 0.0
    %179 = vmatprep.subr.mxu0 0.0
    %180 = vmatpush1.msra.mxu0 0.0
    %181 = vmatprep.subr.mxu0 0.0
    %182 = vmatpush1.msra.mxu0 0.0
    %183 = vmatprep.subr.mxu0 0.0
    %184 = vmatpush1.msra.mxu0 %v76
    %185 = vmatprep.subr.mxu0 0.0
    %186 = vmatpush1.msra.mxu0 %v75
    %187 = vmatprep.subr.mxu0 0.0
    %188 = vmatpush1.msra.mxu0 %v74
    %189 = vmatprep.subr.mxu0 0.0
    %190 = vmatpush1.msra.mxu0 %v73
    %191 = vmatprep.subr.mxu0 0.0
    %192 = vmatpush2.msra.mxu0 0.0
    %193 = vmatprep.subr.mxu0 0.0
    %194 = vmatpush2.msra.mxu0 0.0
    %195 = vmatprep.subr.mxu0 0.0
    %196 = vmatpush2.msra.mxu0 0.0
    %197 = vmatprep.subr.mxu0 0.0
    %198 = vmatpush2.msra.mxu0 0.0
    %199 = vmatprep.subr.mxu0 0.0
    %200 = vmatpush2.msra.mxu0 0.0
    %201 = vmatprep.subr.mxu0 0.0
    %202 = vmatpush2.msra.mxu0 0.0
    %203 = vmatprep.subr.mxu0 0.0
    %204 = vmatpush2.msra.mxu0 0.0
    %205 = vmatprep.subr.mxu0 0.0
    %206 = vmatpush2.msra.mxu0 0.0
    %207 = vmatprep.subr.mxu0 0.0
    %208 = vmatpush2.msra.mxu0 0.0
    %209 = vmatprep.subr.mxu0 0.0
    %210 = vmatpush2.msra.mxu0 0.0
    %211 = vmatprep.subr.mxu0 0.0
    %212 = vmatpush2.msra.mxu0 0.0
    %213 = vmatprep.subr.mxu0 0.0
    %214 = vmatpush2.msra.mxu0 0.0
    %215 = vmatprep.subr.mxu0 0.0
    %216 = vmatpush2.msra.mxu0 0.0
    %217 = vmatprep.subr.mxu0 0.0
    %218 = vmatpush2.msra.mxu0 0.0
    %219 = vmatprep.subr.mxu0 0.0
    %220 = vmatpush2.msra.mxu0 0.0
    %221 = vmatprep.subr.mxu0 0.0
    %222 = vmatpush2.msra.mxu0 0.0
    %223 = vmatprep.mubr.f32.mxu0 0.0
    %224 = vmatmul.mubr.f32.gmra.mxu0 %v157
    %v225 = vpop.f32.mrf.mxu0
    %v226 = vadd.f32 %v153, %v225
    %v227 = vpop.f32.mrf.mxu0
    %228 = vdwg.mxu0
    %v229 = vld [vmem:[%s4] sm:$0x1]
    %v231 = vlaneseq
    %v232 = vshrl.u32 %v231, 7
    %v233 = vsub.s32 0, %v232
    %v234 = vrot.slane %v229, %v233
    %v236 = vadd.f32 %v226, %v234
    %237 = vst.msk [vmem:[#allocation10] sm:$0xff] %vm82, %v236
    // Predicated region
    $region38: #{tpu_custom_call.1} parent=1 // pred_check
      _
    $region39: #{tpu_custom_call.1} parent=1 // pred_check_branch
      %239 = sbr.rel (0) target = $region41
    $region40: #{tpu_custom_call.1} parent=1 // pred_region
      %s241 = ssub.s32 128, 128
      %242 = vsyncadd [#allocation4], %s241
      %s244 = sshll.u32 [#allocation10], 4
      %s245 = int_to_ptr.vmem [resolvable:$true] %s244
      %247 = dma.vmem_to_hbm [thread:$0]  %s245, 128, %s5, [#allocation4]
    $region41: #{tpu_custom_call.1} parent=1 // pred_fallthru
      _
    // Predicated region
    $region42: #{tpu_custom_call.1} parent=1 // pred_check
      _
    $region43: #{tpu_custom_call.1} parent=1 // pred_check_branch
      %249 = sbr.rel (0) target = $region45
    $region44: #{tpu_custom_call.1} parent=1 // pred_region
      %250 = dma.done [#allocation4], 128
    $region45: #{tpu_custom_call.1} parent=1 // pred_fallthru
      _
    %251 = vsyncpa [#allocation3], 1
    %252 = vsyncpa [#allocation6], 1
    %253 = vsyncpa [#allocation9], 1
    %254 = vsyncpa [#allocation4], 1

</llo_original>
